<compile_context>
chip_gen: v7x
topology: tpu7x:2x2x1
jax: 0.10.0
libtpu: 0.0.40
codegen_flags: <defaults>
</compile_context>

<pallas_src>
import jax
import jax.numpy as jnp
from jax.experimental import pallas as pl
from jax.experimental.pallas import tpu as pltpu

LANES = 128
MiB = 1024 * 1024


def _round_up(a: int, b: int) -> int:
    return (a + b - 1) // b * b


def _vmem_capacity_bytes() -> int:
    """Physical VMEM per core; conservative (v7x-sized) fallback if query fails."""
    try:
        cap = int(getattr(pltpu.get_tpu_info(), "vmem_capacity_bytes"))
        if cap > 0:
            return cap
    except Exception:
        pass
    return 64 * MiB


def _make_router_kernel(top_k: int, num_experts: int, e_pad: int):
    def router_kernel(x_ref, w_ref, b_ref, out_ref, idx_ref):
        x = x_ref[...]                      # (tm, D)      x dtype (f32 or bf16)
        w = w_ref[...]                      # (D, e_pad)   same dtype as x (VMEM-resident)
        b = b_ref[...]                      # (1, e_pad)   f32, padded lanes = -inf

        # logits = x @ W^T + b   (weight pre-transposed in the wrapper; f32 accumulation)
        logits = jnp.dot(x, w, preferred_element_type=jnp.float32) + b   # (tm, e_pad) f32

        tm = logits.shape[0]
        col_ids = jax.lax.broadcasted_iota(jnp.int32, logits.shape, 1)   # (tm, e_pad)
        neg_inf = jnp.float32(-jnp.inf)

        # Iterative masked argmax; matches torch.topk first-index tie order exactly.
        work = logits
        keep = jnp.zeros(logits.shape, dtype=jnp.bool_)
        idx_cols = []
        m0 = None
        for step in range(top_k):
            max_val = jnp.max(work, axis=-1, keepdims=True)              # (tm, 1)
            if step == 0:
                m0 = max_val                 # global max; reused as the softmax max
            is_max = work == max_val
            idx = jnp.min(
                jnp.where(is_max, col_ids, jnp.int32(e_pad)),
                axis=-1, keepdims=True,
            )                                                            # (tm, 1)
            idx_cols.append(idx)
            sel = col_ids == idx
            keep = jnp.logical_or(keep, sel)
            work = jnp.where(sel, neg_inf, work)

        # Sparse softmax over the kept lanes.  m0 is always in the kept set, so it is
        # the max of that set -> numerically stable, and saves one cross-lane reduce.
        # Garbage rows in a ragged last tile may produce NaN here; those output rows
        # are out-of-range and discarded by Pallas, so this is harmless by design.
        e = jnp.where(keep, jnp.exp(logits - m0), jnp.float32(0.0))
        denom = jnp.sum(e, axis=-1, keepdims=True)
        probs = e * pl.reciprocal(denom, approx=False)                   # (tm, e_pad)

        # Exact-width output stores (E / top_k are the full last dims of the outputs);
        # the small masked stores are hidden under the matmul / x DMA.
        out_ref[...] = probs if num_experts == e_pad else probs[:, :num_experts]

        lane = jax.lax.broadcasted_iota(jnp.int32, (tm, top_k), 1)
        idx_out = jnp.zeros((tm, top_k), jnp.int32)
        for j, c in enumerate(idx_cols):
            idx_out = jnp.where(lane == j, c, idx_out)
        idx_ref[...] = idx_out

    return router_kernel


def topk_router(x, weight, bias, top_k: int, *, tile_m: int | None = None):
    """x: (N, n_embed); weight: (E, n_embed); bias: (E,).

    Returns (router_output (N, E) f32, indices (N, top_k) i32).
    Tile size / VMEM limit are derived from the device's VMEM capacity unless tile_m
    is given explicitly."""
    N, D = x.shape
    E = weight.shape[0]
    assert 1 <= top_k <= E, "top_k must be in [1, num_experts]"

    # Stream x in its native dtype when possible (bf16 halves the dominant HBM read).
    compute_dtype = jnp.bfloat16 if x.dtype == jnp.bfloat16 else jnp.float32
    x_p = x if x.dtype == compute_dtype else x.astype(compute_dtype)
    x_itemsize = jnp.dtype(compute_dtype).itemsize
    sub = 16 if compute_dtype == jnp.bfloat16 else 8        # sublane packing

    e_pad = _round_up(E, LANES)        # lane-dense expert axis for the in-kernel compute

    # Pre-transpose + expert-pad once (amortized over all tiles; constant-folds under jit
    # when params are constants — hoist to param-load time if calling repeatedly).
    # Padded experts: zero weight columns, -inf bias -> logits = -inf, never selected,
    # contribute exp(.) = 0 to the softmax denominator.
    w_t = jnp.zeros((D, e_pad), compute_dtype).at[:, :E].set(
        weight.astype(compute_dtype).T)
    b_p = jnp.full((1, e_pad), -jnp.inf, jnp.float32).at[0, :E].set(
        bias.astype(jnp.float32))

    # --- generation-aware VMEM budget & tile selection -------------------------------
    cap = _vmem_capacity_bytes()
    # Leave headroom for compiler-internal scratch; never request physical capacity.
    budget = max(min(int(cap * 0.75), cap - 16 * MiB), 16 * MiB)

    def est_vmem(tm_):
        return (2 * tm_ * D * x_itemsize                       # x tile, double-buffered
                + 2 * D * e_pad * x_itemsize                   # resident weight (2 bufs)
                + 2 * 8 * e_pad * 4                            # bias (sublane-padded)
                + 2 * tm_ * _round_up(E, LANES) * 4            # probs out (lane-padded)
                + 2 * tm_ * _round_up(top_k, LANES) * 4)       # indices out (lane-padded)

    if tile_m is None:
        tile_m = sub
        for cand in (1024, 768, 512, 384, 256, 192, 128, 64, 32, 16, 8):
            if cand % sub:
                continue
            if est_vmem(cand) + 2 * MiB <= budget:
                tile_m = cand
                break

    # Keep the block within the array (block <= array along the tiled axis); the ragged
    # last block is handled by Pallas.  Only for N < one sublane tile do we pad rows.
    pad_rows = 0
    if N >= sub:
        max_tm = (N // sub) * sub
    else:
        max_tm = sub
        pad_rows = sub - N
        x_p = jnp.zeros((sub, D), compute_dtype).at[:N].set(x_p)
    n_rows = N + pad_rows
    tm = max(sub, min(_round_up(tile_m, sub), max_tm))
    n_tiles = pl.cdiv(n_rows, tm)

    est = est_vmem(tm)
    vmem_limit = int(min(budget, max(2 * est + 2 * MiB, 24 * MiB)))

    kernel = _make_router_kernel(top_k, E, e_pad)

    out_shapes = (
        jax.ShapeDtypeStruct((n_rows, E), jnp.float32),
        jax.ShapeDtypeStruct((n_rows, top_k), jnp.int32),
    )

    cost = pl.CostEstimate(
        flops=2 * n_rows * D * e_pad,
        transcendentals=n_rows * e_pad,
        bytes_accessed=(n_rows * D * x_itemsize + D * e_pad * x_itemsize + e_pad * 4
                        + n_rows * E * 4 + n_rows * top_k * 4),
    )

    out, idx = pl.pallas_call(
        kernel,
        out_shape=out_shapes,
        grid=(n_tiles,),
        in_specs=[
            pl.BlockSpec((tm, D), lambda i: (i, 0)),        # x: streamed over tokens
            pl.BlockSpec((D, e_pad), lambda i: (0, 0)),     # weight^T: VMEM-resident
            pl.BlockSpec((1, e_pad), lambda i: (0, 0)),     # bias: VMEM-resident
        ],
        out_specs=(
            pl.BlockSpec((tm, E), lambda i: (i, 0)),        # exact width: no post-slice
            pl.BlockSpec((tm, top_k), lambda i: (i, 0)),    # exact width: no post-slice
        ),
        compiler_params=pltpu.CompilerParams(
            dimension_semantics=("parallel",),              # shards token tiles across TCs (v7x)
            vmem_limit_bytes=vmem_limit,
        ),
        cost_estimate=cost,
    )(x_p, w_t, b_p)

    if pad_rows:
        out, idx = out[:N], idx[:N]   # only for N < 8/16; negligible
    return out, idx


def topk_router_ref(x, weight, bias, top_k: int):
    """Pure-JAX reference mirroring the PyTorch forward."""
    logits = x.astype(jnp.float32) @ weight.astype(jnp.float32).T + bias.astype(jnp.float32)
    _, top_idx = jax.lax.top_k(logits, top_k)
    keep = jnp.any(jax.nn.one_hot(top_idx, logits.shape[-1], dtype=bool), axis=1)
    sparse_logits = jnp.where(keep, logits, -jnp.inf)
    return jax.nn.softmax(sparse_logits, axis=-1), top_idx.astype(jnp.int32)


if __name__ == "__main__":
    # Module hyper-parameters (small, consistent with the forward pass)
    batch, seq, n_embed = 2, 8, 32
    num_experts, top_k = 8, 2

    key = jax.random.PRNGKey(0)
    kx, kw, kb = jax.random.split(key, 3)

    # Deterministic parameter init (synthetic; matches nn.Linear shapes)
    bound = 1.0 / (n_embed ** 0.5)
    weight = jax.random.uniform(
        kw, (num_experts, n_embed), jnp.float32, minval=-bound, maxval=bound
    )
    bias = jax.random.uniform(
        kb, (num_experts,), jnp.float32, minval=-bound, maxval=bound
    )

    # Input tokens (flatten batch*seq into rows)
    mh_output = jax.random.normal(kx, (batch, seq, n_embed), dtype=jnp.float32)
    x2d = mh_output.reshape(batch * seq, n_embed)

    router_out, indices = topk_router(x2d, weight, bias, top_k)
    router_out = jax.block_until_ready(router_out)
    indices = jax.block_until_ready(indices)

    # Reshape back to (batch, seq, ...) like the PyTorch module would return
    router_out = router_out.reshape(batch, seq, num_experts)
    indices = indices.reshape(batch, seq, top_k)

    # Sanity check against pure-JAX reference
    ref_out, ref_idx = topk_router_ref(x2d, weight, bias, top_k)
    ref_out = ref_out.reshape(batch, seq, num_experts)
    ref_idx = ref_idx.reshape(batch, seq, top_k)

    assert jnp.allclose(router_out, ref_out, atol=1e-5), "router_output mismatch"
    # indices may differ in order only under exact ties; compare as sets per row
    assert jnp.array_equal(
        jnp.sort(indices, axis=-1), jnp.sort(ref_idx, axis=-1)
    ), "indices mismatch"

    print("KERNEL_OK")
</pallas_src>

<mosaic_0001>
module attributes {stable_mosaic.version = 11 : i64} {
  func.func @router_kernel(%arg0: i32, %arg1: memref<16x32xf32, #tpu.memory_space<vmem>>, %arg2: memref<32x128xf32, #tpu.memory_space<vmem>>, %arg3: memref<1x128xf32, #tpu.memory_space<vmem>>, %arg4: memref<16x8xf32, #tpu.memory_space<vmem>>, %arg5: memref<16x2xi32, #tpu.memory_space<vmem>>) attributes {dimension_semantics = [#tpu.dimension_semantics<parallel>], iteration_bounds = array<i64: 1>, scalar_prefetch = 0 : i64, scratch_operands = 0 : i64, tpu.core_type = #tpu.core_type<tc>, window_params = [{transform_indices = @transform_0, window_bounds = array<i64: 16, 32>}, {pipeline_mode = #tpu.pipeline_mode<synchronous>, transform_indices = @transform_1, window_bounds = array<i64: 32, 128>}, {pipeline_mode = #tpu.pipeline_mode<synchronous>, transform_indices = @transform_2, window_bounds = array<i64: 1, 128>}, {transform_indices = @transform_3, window_bounds = array<i64: 16, 8>}, {transform_indices = @transform_4, window_bounds = array<i64: 16, 2>}]} {
    %c0 = arith.constant 0 : index
    %c0_0 = arith.constant 0 : index
    %0 = vector.load %arg1[%c0, %c0_0] : memref<16x32xf32, #tpu.memory_space<vmem>>, vector<16x32xf32>
    %c0_1 = arith.constant 0 : index
    %c0_2 = arith.constant 0 : index
    %1 = vector.load %arg2[%c0_1, %c0_2] : memref<32x128xf32, #tpu.memory_space<vmem>>, vector<32x128xf32>
    %c0_3 = arith.constant 0 : index
    %c0_4 = arith.constant 0 : index
    %2 = vector.load %arg3[%c0_3, %c0_4] : memref<1x128xf32, #tpu.memory_space<vmem>>, vector<1x128xf32>
    %cst = arith.constant dense<0.000000e+00> : vector<16x128xf32>
    %3 = tpu.matmul %0, %1, %cst {dimension_numbers = #tpu.dot_dimension_numbers<[1], [0], [0], [1], [0, 0, 1, 1], [], []>} : vector<16x32xf32>, vector<32x128xf32>, vector<16x128xf32> -> vector<16x128xf32>
    %4 = vector.broadcast %2 : vector<1x128xf32> to vector<16x128xf32>
    %5 = arith.addf %3, %4 : vector<16x128xf32>
    %6 = tpu.iota {dimensions = array<i32: 1>} : vector<16x128xi32>
    %false = arith.constant false
    %7 = vector.broadcast %false : i1 to vector<16x128xi1>
    %cst_5 = arith.constant dense<0xFF800000> : vector<16xf32>
    %8 = vector.multi_reduction <maximumf>, %5, %cst_5 [1] : vector<16x128xf32> to vector<16xf32>
    %9 = vector.shape_cast %8 : vector<16xf32> to vector<16x1xf32>
    %10 = vector.broadcast %9 : vector<16x1xf32> to vector<16x128xf32>
    %11 = arith.cmpf oeq, %5, %10 : vector<16x128xf32>
    %c128_i32 = arith.constant 128 : i32
    %12 = vector.broadcast %c128_i32 : i32 to vector<16x128xi32>
    %13 = arith.select %11, %6, %12 : vector<16x128xi1>, vector<16x128xi32>
    %cst_6 = arith.constant dense<2147483647> : vector<16xi32>
    %14 = vector.multi_reduction <minsi>, %13, %cst_6 [1] : vector<16x128xi32> to vector<16xi32>
    %15 = vector.shape_cast %14 : vector<16xi32> to vector<16x1xi32>
    %16 = vector.broadcast %15 : vector<16x1xi32> to vector<16x128xi32>
    %17 = arith.cmpi eq, %6, %16 : vector<16x128xi32>
    %18 = arith.ori %7, %17 : vector<16x128xi1>
    %cst_7 = arith.constant 0xFF800000 : f32
    %19 = vector.broadcast %cst_7 : f32 to vector<16x128xf32>
    %20 = arith.select %17, %19, %5 : vector<16x128xi1>, vector<16x128xf32>
    %cst_8 = arith.constant dense<0xFF800000> : vector<16xf32>
    %21 = vector.multi_reduction <maximumf>, %20, %cst_8 [1] : vector<16x128xf32> to vector<16xf32>
    %22 = vector.shape_cast %21 : vector<16xf32> to vector<16x1xf32>
    %23 = vector.broadcast %22 : vector<16x1xf32> to vector<16x128xf32>
    %24 = arith.cmpf oeq, %20, %23 : vector<16x128xf32>
    %c128_i32_9 = arith.constant 128 : i32
    %25 = vector.broadcast %c128_i32_9 : i32 to vector<16x128xi32>
    %26 = arith.select %24, %6, %25 : vector<16x128xi1>, vector<16x128xi32>
    %cst_10 = arith.constant dense<2147483647> : vector<16xi32>
    %27 = vector.multi_reduction <minsi>, %26, %cst_10 [1] : vector<16x128xi32> to vector<16xi32>
    %28 = vector.shape_cast %27 : vector<16xi32> to vector<16x1xi32>
    %29 = vector.broadcast %28 : vector<16x1xi32> to vector<16x128xi32>
    %30 = arith.cmpi eq, %6, %29 : vector<16x128xi32>
    %31 = arith.ori %18, %30 : vector<16x128xi1>
    %32 = vector.broadcast %9 : vector<16x1xf32> to vector<16x128xf32>
    %33 = arith.subf %5, %32 : vector<16x128xf32>
    %34 = math.exp %33 : vector<16x128xf32>
    %cst_11 = arith.constant 0.000000e+00 : f32
    %35 = vector.broadcast %cst_11 : f32 to vector<16x128xf32>
    %36 = arith.select %31, %34, %35 : vector<16x128xi1>, vector<16x128xf32>
    %cst_12 = arith.constant dense<0.000000e+00> : vector<16xf32>
    %37 = vector.multi_reduction <add>, %36, %cst_12 [1] : vector<16x128xf32> to vector<16xf32>
    %38 = vector.shape_cast %37 : vector<16xf32> to vector<16x1xf32>
    %39 = tpu.reciprocal %38 : vector<16x1xf32> -> vector<16x1xf32>
    %40 = vector.broadcast %39 : vector<16x1xf32> to vector<16x128xf32>
    %41 = arith.mulf %36, %40 : vector<16x128xf32>
    %42 = vector.extract_strided_slice %41 {offsets = [0, 0], sizes = [16, 8], strides = [1, 1]} : vector<16x128xf32> to vector<16x8xf32>
    %c0_13 = arith.constant 0 : index
    %c0_14 = arith.constant 0 : index
    %43 = vector.load %arg4[%c0_13, %c0_14] : memref<16x8xf32, #tpu.memory_space<vmem>>, vector<16x8xf32>
    tpu.vector_store %arg4[%c0_13, %c0_14], %42 {strides = array<i32>} : memref<16x8xf32, #tpu.memory_space<vmem>>, vector<16x8xf32>,
    %44 = tpu.iota {dimensions = array<i32: 1>} : vector<16x2xi32>
    %c0_i32 = arith.constant 0 : i32
    %45 = vector.broadcast %c0_i32 : i32 to vector<16x2xi32>
    %c0_i32_15 = arith.constant 0 : i32
    %46 = vector.broadcast %c0_i32_15 : i32 to vector<16x2xi32>
    %47 = arith.cmpi eq, %44, %46 : vector<16x2xi32>
    %48 = vector.shape_cast %15 : vector<16x1xi32> to vector<16x1xi32>
    %49 = vector.broadcast %48 : vector<16x1xi32> to vector<16x2xi32>
    %50 = arith.select %47, %49, %45 : vector<16x2xi1>, vector<16x2xi32>
    %c1_i32 = arith.constant 1 : i32
    %51 = vector.broadcast %c1_i32 : i32 to vector<16x2xi32>
    %52 = arith.cmpi eq, %44, %51 : vector<16x2xi32>
    %53 = vector.shape_cast %28 : vector<16x1xi32> to vector<16x1xi32>
    %54 = vector.broadcast %53 : vector<16x1xi32> to vector<16x2xi32>
    %55 = arith.select %52, %54, %50 : vector<16x2xi1>, vector<16x2xi32>
    %c0_16 = arith.constant 0 : index
    %c0_17 = arith.constant 0 : index
    %56 = vector.load %arg5[%c0_16, %c0_17] : memref<16x2xi32, #tpu.memory_space<vmem>>, vector<16x2xi32>
    tpu.vector_store %arg5[%c0_16, %c0_17], %55 {strides = array<i32>} : memref<16x2xi32, #tpu.memory_space<vmem>>, vector<16x2xi32>,
    return
  }
  func.func @transform_0(%arg0: i32) -> (i32, i32) {
    %c0_i32 = arith.constant 0 : i32
    %c0_i32_0 = arith.constant 0 : i32
    return %arg0, %c0_i32 : i32, i32
  }
  func.func @transform_1(%arg0: i32) -> (i32, i32) {
    %c0_i32 = arith.constant 0 : i32
    %c0_i32_0 = arith.constant 0 : i32
    %c0_i32_1 = arith.constant 0 : i32
    return %c0_i32, %c0_i32_0 : i32, i32
  }
  func.func @transform_2(%arg0: i32) -> (i32, i32) {
    %c0_i32 = arith.constant 0 : i32
    %c0_i32_0 = arith.constant 0 : i32
    %c0_i32_1 = arith.constant 0 : i32
    return %c0_i32, %c0_i32_0 : i32, i32
  }
  func.func @transform_3(%arg0: i32) -> (i32, i32) {
    %c0_i32 = arith.constant 0 : i32
    %c0_i32_0 = arith.constant 0 : i32
    return %arg0, %c0_i32 : i32, i32
  }
  func.func @transform_4(%arg0: i32) -> (i32, i32) {
    %c0_i32 = arith.constant 0 : i32
    %c0_i32_0 = arith.constant 0 : i32
    return %arg0, %c0_i32 : i32, i32
  }
}

</mosaic_0001>

<llo_original>
// kernel: tpu_custom_call.1
$region0: #{tpu_custom_call.1}
  #allocation0 [shape = 'u32[]', space=smem, size = 0x4, offset = 0x4, fixed_abs, tag = 'smem constant byte address 0x4 - core index']
  #allocation1 [shape = 'u32[144,128]{1,0:T(1,128)}', space=vmem, size = 0x12000, scoped, tag = 'internal scratch']
  %s0 = inlined_call_operand.hbm [shape: f32[16,32], index: 0, kind: input, shape index: {}]
  %s1 = inlined_call_operand.hbm [shape: f32[32,128], index: 1, kind: input, shape index: {}]
  %s2 = inlined_call_operand.vmem [shape: f32[1,128], index: 2, kind: input, shape index: {}]
  %s3 = inlined_call_operand.vmem [shape: f32[16,8], index: 3, kind: output, shape index: {0}]
  %s4 = inlined_call_operand.vmem [shape: s32[16,2], index: 4, kind: output, shape index: {1}]
  %5 = xla_tuple %s3, %s4
  %s6 = sld [smem:[#allocation0]]
  $region38: #{tpu_custom_call.1} parent=0
    _
  %s8 = ssub.s32 1, %s6
  %s9 = scalar_select 0, %s8, %s6
  $region1: #{tpu_custom_call.1} parent=0
    #allocation2 [shape = 'u8[8192]{0}', space=vmem, size = 0x2000, scoped, tag = 'input window, operand 0, single buffered']
    #allocation3 [shape = 's32[1]{0}', space=sflag, size = 0x4, scoped, tag = 'scoped memory for tpu_custom_call.1']
    #allocation4 [shape = 'u8[16384]{0}', space=vmem, size = 0x4000, scoped, tag = 'input window, operand 1, single buffered']
    #allocation5 [shape = 's32[1]{0}', space=sflag, size = 0x4, scoped, tag = 'scoped memory for tpu_custom_call.1']
    %10 = vsyncpa [#allocation3], 0
    %11 = vsyncpa [#allocation5], 0
    // Predicated region
    $region2: #{tpu_custom_call.1} parent=1 // pred_check
      _
    $region3: #{tpu_custom_call.1} parent=1 // pred_check_branch
      %13 = sbr.rel (0) target = $region5
    $region4: #{tpu_custom_call.1} parent=1 // pred_region
      %s15 = ssub.s32 256, 256
      %16 = vsyncadd [#allocation3], %s15
      %s17 = sshll.u32 [#allocation2], 4
      %s18 = int_to_ptr.vmem [resolvable:$true] %s17
      %23 = dma.hbm_to_vmem [thread:$0]  %s0, 256, %s18, [#allocation3], 128, 128, 8
    $region5: #{tpu_custom_call.1} parent=1 // pred_fallthru
      _
    // Predicated region
    $region6: #{tpu_custom_call.1} parent=1 // pred_check
      _
    $region7: #{tpu_custom_call.1} parent=1 // pred_check_branch
      %25 = sbr.rel (0) target = $region9
    $region8: #{tpu_custom_call.1} parent=1 // pred_region
      %s27 = ssub.s32 512, 512
      %28 = vsyncadd [#allocation5], %s27
      %s29 = sshll.u32 [#allocation4], 4
      %s30 = int_to_ptr.vmem [resolvable:$true] %s29
      %35 = dma.hbm_to_vmem [thread:$0]  %s1, 512, %s30, [#allocation5], 128, 128, 8
    $region9: #{tpu_custom_call.1} parent=1 // pred_fallthru
      _
    // Predicated region
    $region10: #{tpu_custom_call.1} parent=1 // pred_check
      _
    $region11: #{tpu_custom_call.1} parent=1 // pred_check_branch
      %37 = sbr.rel (0) target = $region13
    $region12: #{tpu_custom_call.1} parent=1 // pred_region
      _
    $region13: #{tpu_custom_call.1} parent=1 // pred_fallthru
      _
    // Predicated region
    $region14: #{tpu_custom_call.1} parent=1 // pred_check
      _
    $region15: #{tpu_custom_call.1} parent=1 // pred_check_branch
      %39 = sbr.rel (0) target = $region17
    $region16: #{tpu_custom_call.1} parent=1 // pred_region
      %40 = dma.done [#allocation3], 256
    $region17: #{tpu_custom_call.1} parent=1 // pred_fallthru
      _
    // Predicated region
    $region18: #{tpu_custom_call.1} parent=1 // pred_check
      _
    $region19: #{tpu_custom_call.1} parent=1 // pred_check_branch
      %42 = sbr.rel (0) target = $region21
    $region20: #{tpu_custom_call.1} parent=1 // pred_region
      %43 = dma.done [#allocation5], 512
    $region21: #{tpu_custom_call.1} parent=1 // pred_fallthru
      _
    %v44 = vld [vmem:[#allocation2] sm:$0xff]
    %v45 = vld [vmem:[#allocation2 + $0x8] sm:$0xff]
    %v46 = vld [vmem:[#allocation4] sm:$0xff]
    %v47 = vld [vmem:[#allocation4 + $0x8] sm:$0xff]
    %v48 = vld [vmem:[#allocation4 + $0x10] sm:$0xff]
    %v49 = vld [vmem:[#allocation4 + $0x18] sm:$0xff]
    %v50 = vld [vmem:[%s2] sm:$0x1]
    %v52 = vlaneseq
    %v53 = vshrl.u32 %v52, 7
    %v54 = vsub.s32 0, %v53
    %v55 = vrot.slane %v50, %v54
    %vm57 = vcmask 261120
    %v59 = vsel %vm57, %v44, 0
    %v62 = vsel %vm57, %v45, 0
    %64 = vmatprep.subr.mxu0 0.0
    %65 = vmatpush1.msra.mxu0 %v46
    %66 = vmatprep.subr.mxu0 0.0
    %67 = vmatpush1.msra.mxu0 %v47
    %68 = vmatprep.subr.mxu0 0.0
    %69 = vmatpush1.msra.mxu0 %v48
    %70 = vmatprep.subr.mxu0 0.0
    %71 = vmatpush1.msra.mxu0 %v49
    %72 = vmatprep.subr.mxu0 0.0
    %73 = vmatpush1.msra.mxu0 0.0
    %74 = vmatprep.subr.mxu0 0.0
    %75 = vmatpush1.msra.mxu0 0.0
    %76 = vmatprep.subr.mxu0 0.0
    %77 = vmatpush1.msra.mxu0 0.0
    %78 = vmatprep.subr.mxu0 0.0
    %79 = vmatpush1.msra.mxu0 0.0
    %80 = vmatprep.subr.mxu0 0.0
    %81 = vmatpush1.msra.mxu0 0.0
    %82 = vmatprep.subr.mxu0 0.0
    %83 = vmatpush1.msra.mxu0 0.0
    %84 = vmatprep.subr.mxu0 0.0
    %85 = vmatpush1.msra.mxu0 0.0
    %86 = vmatprep.subr.mxu0 0.0
    %87 = vmatpush1.msra.mxu0 0.0
    %88 = vmatprep.subr.mxu0 0.0
    %89 = vmatpush1.msra.mxu0 0.0
    %90 = vmatprep.subr.mxu0 0.0
    %91 = vmatpush1.msra.mxu0 0.0
    %92 = vmatprep.subr.mxu0 0.0
    %93 = vmatpush1.msra.mxu0 0.0
    %94 = vmatprep.subr.mxu0 0.0
    %95 = vmatpush1.msra.mxu0 0.0
    %96 = vmatprep.subr.mxu0 0.0
    %97 = vmatpush1.msra.mxu0 0.0
    %98 = vmatprep.subr.mxu0 0.0
    %99 = vmatpush1.msra.mxu0 0.0
    %100 = vmatprep.subr.mxu0 0.0
    %101 = vmatpush1.msra.mxu0 0.0
    %102 = vmatprep.subr.mxu0 0.0
    %103 = vmatpush1.msra.mxu0 0.0
    %104 = vmatprep.subr.mxu0 0.0
    %105 = vmatpush1.msra.mxu0 0.0
    %106 = vmatprep.subr.mxu0 0.0
    %107 = vmatpush1.msra.mxu0 0.0
    %108 = vmatprep.subr.mxu0 0.0
    %109 = vmatpush1.msra.mxu0 0.0
    %110 = vmatprep.subr.mxu0 0.0
    %111 = vmatpush1.msra.mxu0 0.0
    %112 = vmatprep.subr.mxu0 0.0
    %113 = vmatpush1.msra.mxu0 0.0
    %114 = vmatprep.subr.mxu0 0.0
    %115 = vmatpush1.msra.mxu0 0.0
    %116 = vmatprep.subr.mxu0 0.0
    %117 = vmatpush1.msra.mxu0 0.0
    %118 = vmatprep.subr.mxu0 0.0
    %119 = vmatpush1.msra.mxu0 0.0
    %120 = vmatprep.subr.mxu0 0.0
    %121 = vmatpush1.msra.mxu0 0.0
    %122 = vmatprep.subr.mxu0 0.0
    %123 = vmatpush1.msra.mxu0 0.0
    %124 = vmatprep.subr.mxu0 0.0
    %125 = vmatpush1.msra.mxu0 0.0
    %126 = vmatprep.subr.mxu0 0.0
    %127 = vmatpush1.msra.mxu0 0.0
    %128 = vmatprep.mubr.f32.mxu0 0.0
    %129 = vmatmul.mubr.f32.gmra.mrb[0].mxu0 %v59
    %v130 = vpop.f32.mrb[0].mxu0
    %v131 = vadd.f32 %v55, %v130
    %v132 = vpop.f32.mrb[0].mxu0
    %133 = vmatprep.mubr.f32.mxu0 0.0
    %134 = vmatmul.mubr.f32.gmra.mrb[0].mxu0 %v62
    %v135 = vpop.f32.mrb[0].mxu0
    %v136 = vadd.f32 %v55, %v135
    %v137 = vpop.f32.mrb[0].mxu0
    %138 = vdwg.mxu0
    %v139 = vlaneseq
    %v140 = vand.u32 %v139, 127
    %141 = vmax.xlane.f32.xlu0 %v131
    %v142 = vpop.xlane.xlu0 %141
    %143 = vmax.xlane.f32.xlu0 %v136
    %v144 = vpop.xlane.xlu0 %143
    %vm145 = vcmp.eq.f32.partialorder %v131, %v142
    %vm146 = vcmp.eq.f32.partialorder %v136, %v144
    %v147 = vsel %vm145, %v140, 128
    %v148 = vsel %vm146, %v140, 128
    %v149 = vand.u32 %v147, 65535
    %v150 = vshra.s32 %v147, 16
    %v151 = vcvt.s32.f32 %v149
    %v152 = vcvt.s32.f32 %v150
    %153 = vmin.xlane.f32.xlu0 %v152
    %v154 = vpop.xlane.xlu0 %153
    %vm155 = vcmp.eq.f32.partialorder %v152, %v154
    %v156 = vsel %vm155, %v151, inf
    %157 = vmin.xlane.f32.xlu0 %v156
    %v158 = vpop.xlane.xlu0 %157
    %v159 = vcvt.f32.s32 %v158
    %v160 = vcvt.f32.s32 %v154
    %v161 = vshll.u32 %v160, 16
    %v162 = vadd.s32 %v161, %v159
    %v163 = vand.u32 %v148, 65535
    %v164 = vshra.s32 %v148, 16
    %v165 = vcvt.s32.f32 %v163
    %v166 = vcvt.s32.f32 %v164
    %167 = vmin.xlane.f32.xlu0 %v166
    %v168 = vpop.xlane.xlu0 %167
    %vm169 = vcmp.eq.f32.partialorder %v166, %v168
    %v170 = vsel %vm169, %v165, inf
    %171 = vmin.xlane.f32.xlu0 %v170
    %v172 = vpop.xlane.xlu0 %171
    %v173 = vcvt.f32.s32 %v172
    %v174 = vcvt.f32.s32 %v168
    %v175 = vshll.u32 %v174, 16
    %v176 = vadd.s32 %v175, %v173
    %vm177 = vcmp.eq.s32.totalorder %v140, %v162
    %vm178 = vcmp.eq.s32.totalorder %v140, %v176
    %v179 = vsel %vm177, -inf, %v131
    %v180 = vsel %vm178, -inf, %v136
    %181 = vmax.xlane.f32.xlu0 %v179
    %v182 = vpop.xlane.xlu0 %181
    %183 = vmax.xlane.f32.xlu0 %v180
    %v184 = vpop.xlane.xlu0 %183
    %vm185 = vcmp.eq.f32.partialorder %v179, %v182
    %vm186 = vcmp.eq.f32.partialorder %v180, %v184
    %v187 = vsel %vm185, %v140, 128
    %v188 = vsel %vm186, %v140, 128
    %v189 = vand.u32 %v187, 65535
    %v190 = vshra.s32 %v187, 16
    %v191 = vcvt.s32.f32 %v189
    %v192 = vcvt.s32.f32 %v190
    %193 = vmin.xlane.f32.xlu0 %v192
    %v194 = vpop.xlane.xlu0 %193
    %vm195 = vcmp.eq.f32.partialorder %v192, %v194
    %v196 = vsel %vm195, %v191, inf
    %197 = vmin.xlane.f32.xlu0 %v196
    %v198 = vpop.xlane.xlu0 %197
    %v199 = vcvt.f32.s32 %v198
    %v200 = vcvt.f32.s32 %v194
    %v201 = vshll.u32 %v200, 16
    %v202 = vadd.s32 %v201, %v199
    %v203 = vand.u32 %v188, 65535
    %v204 = vshra.s32 %v188, 16
    %v205 = vcvt.s32.f32 %v203
    %v206 = vcvt.s32.f32 %v204
    %207 = vmin.xlane.f32.xlu0 %v206
    %v208 = vpop.xlane.xlu0 %207
    %vm209 = vcmp.eq.f32.partialorder %v206, %v208
    %v210 = vsel %vm209, %v205, inf
    %211 = vmin.xlane.f32.xlu0 %v210
    %v212 = vpop.xlane.xlu0 %211
    %v213 = vcvt.f32.s32 %v212
    %v214 = vcvt.f32.s32 %v208
    %v215 = vshll.u32 %v214, 16
    %v216 = vadd.s32 %v215, %v213
    %vm217 = vcmp.eq.s32.totalorder %v140, %v202
    %vm218 = vcmp.eq.s32.totalorder %v140, %v216
    %vm219 = vmor %vm177, %vm217
    %vm220 = vmor %vm178, %vm218
    %v221 = vsub.f32 %v131, %v142
    %v222 = vsub.f32 %v136, %v144
    %v223 = vmul.f32 %v221, 1.442695
    %v224 = vpow.pop %v223
    %v225 = vmul.f32 %v222, 1.442695
    %v226 = vpow.pop %v225
    %v227 = vsel %vm219, %v224, 0.0
    %v228 = vsel %vm220, %v226, 0.0
    %229 = vadd.xlane.f32.xlu0 %v227
    %v230 = vpop.xlane.xlu0 %229
    %231 = vadd.xlane.f32.xlu0 %v228
    %v232 = vpop.xlane.xlu0 %231
    %v233 = vrcp.pop %v230
    %v234 = vrcp.pop %v232
    %v235 = vmul.f32 %v227, %v233
    %v236 = vmul.f32 %v228, %v234
    %vm237 = vcmask 64512
    %238 = vst.msk [vmem:[%s3] sm:$0xff] %vm237, %v235
    %239 = vst.msk [vmem:[%s3 + $0x8] sm:$0xff] %vm237, %v236
    %vm240 = vcmp.eq.s32.totalorder %v140, 0
    %v241 = vsel %vm240, %v162, 0
    %v242 = vsel %vm240, %v176, 0
    %vm243 = vcmp.eq.s32.totalorder %v140, 1
    %v244 = vsel %vm243, %v202, %v241
    %v245 = vsel %vm243, %v216, %v242
    %vm246 = vcmask 15360
    %247 = vst.msk [vmem:[%s4] sm:$0xff] %vm246, %v244
    %248 = vst.msk [vmem:[%s4 + $0x8] sm:$0xff] %vm246, %v245
    // Predicated region
    $region22: #{tpu_custom_call.1} parent=1 // pred_check
      _
    $region23: #{tpu_custom_call.1} parent=1 // pred_check_branch
      %250 = sbr.rel (0) target = $region25
    $region24: #{tpu_custom_call.1} parent=1 // pred_region
      _
    $region25: #{tpu_custom_call.1} parent=1 // pred_fallthru
      _
    // Predicated region
    $region26: #{tpu_custom_call.1} parent=1 // pred_check
      _
    $region27: #{tpu_custom_call.1} parent=1 // pred_check_branch
      %252 = sbr.rel (0) target = $region29
    $region28: #{tpu_custom_call.1} parent=1 // pred_region
      _
    $region29: #{tpu_custom_call.1} parent=1 // pred_fallthru
      _
    // Predicated region
    $region30: #{tpu_custom_call.1} parent=1 // pred_check
      _
    $region31: #{tpu_custom_call.1} parent=1 // pred_check_branch
      %254 = sbr.rel (0) target = $region33
    $region32: #{tpu_custom_call.1} parent=1 // pred_region
      _
    $region33: #{tpu_custom_call.1} parent=1 // pred_fallthru
      _
    // Predicated region
    $region34: #{tpu_custom_call.1} parent=1 // pred_check
      _
    $region35: #{tpu_custom_call.1} parent=1 // pred_check_branch
      %256 = sbr.rel (0) target = $region37
    $region36: #{tpu_custom_call.1} parent=1 // pred_region
      _
    $region37: #{tpu_custom_call.1} parent=1 // pred_fallthru
      _
    %257 = vsyncpa [#allocation3], 1
    %258 = vsyncpa [#allocation5], 1

</llo_original>
